<compile_context>
chip_gen: v5e
topology: v5e:2x2
jax: 0.10.0
libtpu: 0.0.40
codegen_flags: <defaults>
</compile_context>

<pallas_src>
import functools

import jax
import jax.numpy as jnp
from jax.experimental import pallas as pl
from jax.experimental.pallas import tpu as pltpu

_LANES = 128


def _round_up(n, m):
    return ((n + m - 1) // m) * m


def _logistic_kernel(x_ref, m_ref, b_ref, o_ref):
    # x_ref: (tr, 128) f32 VMEM (pipelined) -- 16 samples x 8 features per row
    # m_ref: (128, 16) f32 VMEM (resident)  -- block-diagonal replicated weights
    # b_ref: (1, 1)    f32 SMEM             -- scalar bias
    # o_ref: (tr, 16)  f32 VMEM             -- one probability per packed sample
    logits = jnp.dot(x_ref[...], m_ref[...], preferred_element_type=jnp.float32)
    o_ref[...] = jax.nn.sigmoid(logits + b_ref[0, 0]).astype(o_ref.dtype)


@functools.partial(jax.jit, static_argnames=("batch_tile",))
def binary_classifier_forward(x, weight, bias, *, batch_tile=65536):
    """sigmoid(x @ weight.T + bias).

    x: (B, 8) f32, weight: (1, 8) f32 (PyTorch nn.Linear layout), bias: (1,) f32.
    Returns (B, 1) f32.
    """
    B, F = x.shape
    assert weight.shape == (1, F) and bias.shape == (1,)
    assert _LANES % F == 0
    group = _LANES // F                      # samples packed per 128-lane row (16)

    # Pad only when the lane-dense reshape requires it (B % 16 != 0) or the
    # batch is tiny; pad granularity is 128 rows, never the tile size.
    if B % group != 0 or B < _LANES:
        b_padded = _round_up(max(B, _LANES), _LANES)
        x = jnp.pad(x, ((0, b_padded - B), (0, 0)))
    else:
        b_padded = B

    rows = b_padded // group
    # Free (bitcast) reshape: no HBM relayout of x.
    x2 = x.astype(jnp.float32).reshape(rows, _LANES)

    # Row tile: batch_tile samples -> batch_tile/group rows, multiple of 8.
    tr = max(8, _round_up(batch_tile // group, 8))
    tr = min(tr, rows)
    grid = (pl.cdiv(rows, tr),)              # ragged last block handled by Pallas

    # Block-diagonal weight matrix: M[g*F + f, j] = w[f] if g == j else 0, so
    # (x2 @ M)[r, j] = <x[group*r + j, :], w>.
    w = weight.reshape(F).astype(jnp.float32)
    m = (jnp.eye(group, dtype=jnp.float32)[:, None, :]
         * w[None, :, None]).reshape(group * F, group)
    b2d = bias.reshape(1, 1).astype(jnp.float32)

    # Double-buffered input + (lane-padded) output blocks; raise the scoped
    # VMEM limit only when the requested tile actually needs it.
    footprint = 4 * tr * _LANES * 4 + (1 << 20)
    cp_kwargs = {"dimension_semantics": ("parallel",)}
    if footprint > (12 << 20):
        cp_kwargs["vmem_limit_bytes"] = min(footprint + (8 << 20), 56 << 20)

    out2 = pl.pallas_call(
        _logistic_kernel,
        out_shape=jax.ShapeDtypeStruct((rows, group), jnp.float32),
        grid_spec=pltpu.PrefetchScalarGridSpec(
            num_scalar_prefetch=0,
            grid=grid,
            in_specs=[
                pl.BlockSpec((tr, _LANES), lambda i: (i, 0)),           # x tiles
                pl.BlockSpec((group * F, group), lambda i: (0, 0)),     # weights, resident
                pl.BlockSpec(memory_space=pltpu.MemorySpace.SMEM),      # bias scalar
            ],
            out_specs=pl.BlockSpec((tr, group), lambda i: (i, 0)),
        ),
        compiler_params=pltpu.CompilerParams(**cp_kwargs),
    )(x2, m, b2d)

    # Bitcast back to one probability per sample; drop any padded tail.
    return out2.reshape(-1)[:B].reshape(B, 1)


if __name__ == "__main__":
    key = jax.random.PRNGKey(0)
    k_x, k_w, k_b = jax.random.split(key, 3)

    in_features, out_features = 8, 1

    # nn.Linear-style init: U(-1/sqrt(in), 1/sqrt(in))
    bound = 1.0 / jnp.sqrt(jnp.float32(in_features))
    weight = jax.random.uniform(
        k_w, (out_features, in_features), jnp.float32, -bound, bound
    )
    bias = jax.random.uniform(k_b, (out_features,), jnp.float32, -bound, bound)

    def reference(x):
        # Elementwise f32 reference (avoids matmul-precision ambiguity).
        return jax.nn.sigmoid(jnp.sum(x * weight, axis=-1, keepdims=True) + bias)

    # Cover: the module's nominal tiny batch, a batch that is not a multiple of
    # 16/128 (padding/slicing path), and a batch spanning multiple ragged grid
    # steps with zero wrapper-side padding.
    for batch in (8, 1000, 70000):
        xk = jax.random.fold_in(k_x, batch)
        x = jax.random.normal(xk, (batch, in_features), jnp.float32)

        out = jax.block_until_ready(binary_classifier_forward(x, weight, bias))
        ref = reference(x)

        assert out.shape == (batch, 1), out.shape
        max_err = float(jnp.max(jnp.abs(out - ref)))
        assert jnp.allclose(out, ref, atol=2e-3, rtol=0.0), max_err

    print("KERNEL_OK")
</pallas_src>

<mosaic_0001>
module attributes {stable_mosaic.version = 11 : i64} {
  func.func @_logistic_kernel(%arg0: i32, %arg1: memref<8x128xf32, #tpu.memory_space<vmem>>, %arg2: memref<128x16xf32, #tpu.memory_space<vmem>>, %arg3: memref<1x1xf32, #tpu.memory_space<smem>>, %arg4: memref<8x16xf32, #tpu.memory_space<vmem>>) attributes {dimension_semantics = [#tpu.dimension_semantics<parallel>], iteration_bounds = array<i64: 1>, scalar_prefetch = 0 : i64, scratch_operands = 0 : i64, tpu.core_type = #tpu.core_type<tc>, window_params = [{transform_indices = @transform_0, window_bounds = array<i64: 8, 128>}, {pipeline_mode = #tpu.pipeline_mode<synchronous>, transform_indices = @transform_1, window_bounds = array<i64: 128, 16>}, {transform_indices = @transform_2, window_bounds = array<i64: 1, 1>}, {transform_indices = @transform_3, window_bounds = array<i64: 8, 16>}]} {
    %c0 = arith.constant 0 : index
    %c0_0 = arith.constant 0 : index
    %0 = vector.load %arg1[%c0, %c0_0] : memref<8x128xf32, #tpu.memory_space<vmem>>, vector<8x128xf32>
    %c0_1 = arith.constant 0 : index
    %c0_2 = arith.constant 0 : index
    %1 = vector.load %arg2[%c0_1, %c0_2] : memref<128x16xf32, #tpu.memory_space<vmem>>, vector<128x16xf32>
    %cst = arith.constant dense<0.000000e+00> : vector<8x16xf32>
    %2 = tpu.matmul %0, %1, %cst {dimension_numbers = #tpu.dot_dimension_numbers<[1], [0], [0], [1], [0, 0, 1, 1], [], []>} : vector<8x128xf32>, vector<128x16xf32>, vector<8x16xf32> -> vector<8x16xf32>
    %c0_3 = arith.constant 0 : index
    %c0_4 = arith.constant 0 : index
    %3 = memref.load %arg3[%c0_3, %c0_4] : memref<1x1xf32, #tpu.memory_space<smem>>
    %4 = vector.broadcast %3 : f32 to vector<8x16xf32>
    %5 = arith.addf %2, %4 : vector<8x16xf32>
    %6 = arith.negf %5 : vector<8x16xf32>
    %7 = math.exp %6 : vector<8x16xf32>
    %cst_5 = arith.constant 1.000000e+00 : f32
    %8 = vector.broadcast %cst_5 : f32 to vector<8x16xf32>
    %9 = arith.addf %8, %7 : vector<8x16xf32>
    %10 = arith.divf %8, %9 : vector<8x16xf32>
    %c0_6 = arith.constant 0 : index
    %c0_7 = arith.constant 0 : index
    %11 = vector.load %arg4[%c0_6, %c0_7] : memref<8x16xf32, #tpu.memory_space<vmem>>, vector<8x16xf32>
    tpu.vector_store %arg4[%c0_6, %c0_7], %10 {strides = array<i32>} : memref<8x16xf32, #tpu.memory_space<vmem>>, vector<8x16xf32>,
    return
  }
  func.func @transform_0(%arg0: i32) -> (i32, i32) {
    %c0_i32 = arith.constant 0 : i32
    %c0_i32_0 = arith.constant 0 : i32
    return %arg0, %c0_i32 : i32, i32
  }
  func.func @transform_1(%arg0: i32) -> (i32, i32) {
    %c0_i32 = arith.constant 0 : i32
    %c0_i32_0 = arith.constant 0 : i32
    %c0_i32_1 = arith.constant 0 : i32
    return %c0_i32, %c0_i32_0 : i32, i32
  }
  func.func @transform_2(%arg0: i32) -> (i32, i32) {
    %c0_i32 = arith.constant 0 : i32
    %c0_i32_0 = arith.constant 0 : i32
    %c0_i32_1 = arith.constant 0 : i32
    return %c0_i32, %c0_i32_0 : i32, i32
  }
  func.func @transform_3(%arg0: i32) -> (i32, i32) {
    %c0_i32 = arith.constant 0 : i32
    %c0_i32_0 = arith.constant 0 : i32
    return %arg0, %c0_i32 : i32, i32
  }
}

</mosaic_0001>

<llo_original>
// kernel: binary_classifier_forward.1
$region0: #{binary_classifier_forward.1}
  #allocation0 [shape = 'u32[]', space=smem, size = 0x4, offset = 0x4, fixed_abs, tag = 'smem constant byte address 0x4 - core index']
  #allocation1 [shape = 'u32[72,128]{1,0:T(1,128)}', space=vmem, size = 0x9000, scoped, tag = 'internal scratch']
  #allocation2 [shape = 'f32[1,1]{1,0:T(1,128)S(6)}', space=smem, size = 0x200, scoped, tag = 'scoped memory for binary_classifier_forward.1']
  %s0 = inlined_call_operand.vmem [shape: f32[8,128], index: 0, kind: input, shape index: {}]
  %s1 = inlined_call_operand.vmem [shape: f32[128,16], index: 1, kind: input, shape index: {}]
  %s2 = inlined_call_operand.<no memory space> [shape: f32[1,1], index: 2, kind: input, shape index: {}]
  %s3 = inlined_call_operand.vmem [shape: f32[8,16], index: 3, kind: output, shape index: {}]
  %s4 = sld [smem:[#allocation0]]
  $region22: #{binary_classifier_forward.1} parent=0
    _
  %s6 = ssub.s32 1, %s4
  %s7 = scalar_select 0, %s6, %s4
  %8 = sst [smem:[#allocation2]] %s2
  // Predicated region
  $region2: #{binary_classifier_forward.1} parent=0 // pred_check
    _
  $region3: #{binary_classifier_forward.1} parent=0 // pred_check_branch
    %10 = sbr.rel (0) target = $region5
  $region4: #{binary_classifier_forward.1} parent=0 // pred_region
    _
  $region5: #{binary_classifier_forward.1} parent=0 // pred_fallthru
    _
  // Predicated region
  $region6: #{binary_classifier_forward.1} parent=0 // pred_check
    _
  $region7: #{binary_classifier_forward.1} parent=0 // pred_check_branch
    %12 = sbr.rel (0) target = $region9
  $region8: #{binary_classifier_forward.1} parent=0 // pred_region
    _
  $region9: #{binary_classifier_forward.1} parent=0 // pred_fallthru
    _
  // Predicated region
  $region10: #{binary_classifier_forward.1} parent=0 // pred_check
    _
  $region11: #{binary_classifier_forward.1} parent=0 // pred_check_branch
    %14 = sbr.rel (0) target = $region13
  $region12: #{binary_classifier_forward.1} parent=0 // pred_region
    _
  $region13: #{binary_classifier_forward.1} parent=0 // pred_fallthru
    _
  %v15 = vld [vmem:[%s0] sm:$0xff]
  %v16 = vld [vmem:[%s1] sm:$0xff]
  %v17 = vld [vmem:[%s1 + $0x8] sm:$0xff]
  %v18 = vld [vmem:[%s1 + $0x10] sm:$0xff]
  %v19 = vld [vmem:[%s1 + $0x18] sm:$0xff]
  %v20 = vld [vmem:[%s1 + $0x20] sm:$0xff]
  %v21 = vld [vmem:[%s1 + $0x28] sm:$0xff]
  %v22 = vld [vmem:[%s1 + $0x30] sm:$0xff]
  %v23 = vld [vmem:[%s1 + $0x38] sm:$0xff]
  %v24 = vld [vmem:[%s1 + $0x40] sm:$0xff]
  %v25 = vld [vmem:[%s1 + $0x48] sm:$0xff]
  %v26 = vld [vmem:[%s1 + $0x50] sm:$0xff]
  %v27 = vld [vmem:[%s1 + $0x58] sm:$0xff]
  %v28 = vld [vmem:[%s1 + $0x60] sm:$0xff]
  %v29 = vld [vmem:[%s1 + $0x68] sm:$0xff]
  %v30 = vld [vmem:[%s1 + $0x70] sm:$0xff]
  %v31 = vld [vmem:[%s1 + $0x78] sm:$0xff]
  %s32 = sld [smem:[#allocation2]]
  %v33 = vstv %s32
  %34 = vmatpush.msra.mxu0 %v31
  %35 = vmatpush.msra.mxu0 %v30
  %36 = vmatpush.msra.mxu0 %v29
  %37 = vmatpush.msra.mxu0 %v28
  %38 = vmatpush.msra.mxu0 %v27
  %39 = vmatpush.msra.mxu0 %v26
  %40 = vmatpush.msra.mxu0 %v25
  %41 = vmatpush.msra.mxu0 %v24
  %42 = vmatpush.msra.mxu0 %v23
  %43 = vmatpush.msra.mxu0 %v22
  %44 = vmatpush.msra.mxu0 %v21
  %45 = vmatpush.msra.mxu0 %v20
  %46 = vmatpush.msra.mxu0 %v19
  %47 = vmatpush.msra.mxu0 %v18
  %48 = vmatpush.msra.mxu0 %v17
  %49 = vmatpush.msra.mxu0 %v16
  %50 = vmatmul.f32.gmra.mxu0 %v15
  %v51 = vpop.f32.mrf.mxu0
  %v52 = vadd.f32 %v33, %v51
  %53 = vdwg.mxu0
  %v54 = vxor.u32 %v52, 2147483648
  %v55 = vmul.f32 %v54, 1.442695
  %v56 = vpow.pop %v55
  %v57 = vadd.f32 %v56, 1.0
  %v58 = vrcp.pop %v57
  %v59 = vmul.f32 %v57, %v58
  %v60 = vsub.f32 1.0, %v59
  %v61 = vmul.f32 %v58, %v60
  %v62 = vadd.f32 %v58, %v61
  %vm63 = vweird.f32 %v57
  %vm64 = vweird.f32 %v58
  %vm65 = vmor %vm63, %vm64
  %v66 = vsel %vm65, %v58, %v62
  %v67 = vand.u32 2147483647, %v57
  %vm68 = vcmp.eq.f32.partialorder %v67, 8.507059e+37
  %v69 = vand.u32 %v57, 2147483648
  %v70 = vor.u32 1.1754944e-38, %v69
  %v71 = vsel %vm68, %v70, %v66
  %v72 = vmul.f32 1.0, %v71
  %vm73 = vcmask 130048
  %74 = vst.msk [vmem:[%s3] sm:$0xff] %vm73, %v72
  // Predicated region
  $region14: #{binary_classifier_forward.1} parent=0 // pred_check
    _
  $region15: #{binary_classifier_forward.1} parent=0 // pred_check_branch
    %76 = sbr.rel (0) target = $region17
  $region16: #{binary_classifier_forward.1} parent=0 // pred_region
    _
  $region17: #{binary_classifier_forward.1} parent=0 // pred_fallthru
    _
  // Predicated region
  $region18: #{binary_classifier_forward.1} parent=0 // pred_check
    _
  $region19: #{binary_classifier_forward.1} parent=0 // pred_check_branch
    %78 = sbr.rel (0) target = $region21
  $region20: #{binary_classifier_forward.1} parent=0 // pred_region
    _
  $region21: #{binary_classifier_forward.1} parent=0 // pred_fallthru
    _

</llo_original>
